<compile_context>
chip_gen: v5e
topology: v5e:2x2
jax: 0.10.0
libtpu: 0.0.40
codegen_flags: <defaults>
</compile_context>

<pallas_src>
import functools

import jax
import jax.numpy as jnp
from jax.experimental import pallas as pl
from jax.experimental.pallas import tpu as pltpu


def _round_up(v, m):
    return ((v + m - 1) // m) * m


def _mlp_kernel(x_ref, w1_ref, b1_ref, w2_ref, b2_ref, w3_ref, b3_ref, o_ref,
                *, compute_dtype):
    # Layer 1: Linear(F -> H1) + ReLU. MXU matmul (bf16 in, f32 accumulate),
    # bias add + ReLU in f32 on the VPU (free filler next to MXU work).
    x = x_ref[...].astype(compute_dtype)
    h1 = jnp.dot(x, w1_ref[...], preferred_element_type=jnp.float32)
    h1 = jnp.maximum(h1 + b1_ref[...], 0.0)
    # Layer 2: Linear(H1 -> H2) + ReLU.
    h2 = jnp.dot(h1.astype(compute_dtype), w2_ref[...],
                 preferred_element_type=jnp.float32)
    h2 = jnp.maximum(h2 + b2_ref[...], 0.0)
    # Layer 3: Linear(H2 -> NPAD), no activation. NPAD is lane-dense (128),
    # so the store below is a full unmasked vst.
    out = jnp.dot(h2.astype(compute_dtype), w3_ref[...],
                  preferred_element_type=jnp.float32)
    o_ref[...] = (out + b3_ref[...]).astype(o_ref.dtype)


def init_params(key, num_points=256, hidden_dims=(256, 128), n_classes=40,
                dtype=jnp.float32):
    """Deterministic parameter init (PyTorch-style uniform bounds)."""
    dims = [num_points * 3, *hidden_dims, n_classes]
    params = []
    for i in range(len(dims) - 1):
        fan_in, fan_out = dims[i], dims[i + 1]
        key, kw, kb = jax.random.split(key, 3)
        bound = 1.0 / float(fan_in) ** 0.5
        # stored as (in, out) so the kernel computes x @ W + b
        w = jax.random.uniform(kw, (fan_in, fan_out), dtype, -bound, bound)
        b = jax.random.uniform(kb, (1, fan_out), dtype, -bound, bound)
        params.append((w, b))
    return params


def _random_permute(key, x):
    """Training-only augmentation: independent row permutation per sample
    (plain-JAX glue, equivalent to torch.gather with per-sample randperm)."""
    # TODO(synk): fuse this gather into the kernel (DMA the unpermuted tile +
    # int32 indices, gather in VMEM) to avoid one extra HBM pass over x in the
    # training path; kept in plain JAX here because a per-row dynamic gather
    # inside Mosaic is not guaranteed to lower on all generations.
    B, N, _ = x.shape
    keys = jax.random.split(key, B)
    idx = jax.vmap(lambda k: jax.random.permutation(k, N))(keys)  # (B, N)
    return jax.vmap(lambda xb, ib: xb[ib])(x, idx)


def _pick_batch_tile(B, cap=1024):
    """Sublane-aligned batch tile; guarantees >= 2 grid tiles when B allows it
    so both v7x TensorCores get work under ("parallel",) semantics."""
    tb = min(cap, _round_up(pl.cdiv(B, 2), 8))
    return max(tb, 8)


@functools.partial(jax.jit, static_argnames=("training", "compute_dtype"))
def data_augmentation_mlp_forward(x, params, *, training=False, aug_key=None,
                                  compute_dtype=jnp.bfloat16):
    """
    x : (B, N, 3)  ->  logits (B, n_classes)
    """
    if training:
        if aug_key is None:
            raise ValueError("training=True requires an explicit aug_key "
                             "(pass a fresh PRNGKey per step).")
        x = _random_permute(aug_key, x)

    B = x.shape[0]
    x_flat = x.reshape(B, -1)                       # (B, N*3), stays f32 in HBM
    F = x_flat.shape[1]

    (w1, b1), (w2, b2), (w3, b3) = params
    H1, H2, n_classes = w1.shape[1], w2.shape[1], w3.shape[1]

    # --- pad classifier output to a lane-dense width (multiple of 128) ------
    NPAD = max(128, _round_up(n_classes, 128))
    w3p = jnp.zeros((H2, NPAD), w3.dtype).at[:, :n_classes].set(w3)
    b3p = jnp.zeros((1, NPAD), b3.dtype).at[:, :n_classes].set(b3)

    # matmul operands in compute dtype (halves weight DMA bytes on v6e/v7x);
    # biases stay f32 for the VPU bias-add / ReLU.
    w1c = w1.astype(compute_dtype)
    w2c = w2.astype(compute_dtype)
    w3c = w3p.astype(compute_dtype)
    b1f = b1.astype(jnp.float32)
    b2f = b2.astype(jnp.float32)
    b3f = b3p.astype(jnp.float32)

    # --- batch tiling (no host-side padding: Pallas masks the edge block) ---
    TB = _pick_batch_tile(B)
    grid = (pl.cdiv(B, TB),)
    rows = grid[0] * TB                              # rows actually processed

    flops = 2 * rows * (F * H1 + H1 * H2 + H2 * NPAD)
    bytes_accessed = (
        x_flat.size * x_flat.dtype.itemsize
        + w1c.size * w1c.dtype.itemsize
        + w2c.size * w2c.dtype.itemsize
        + w3c.size * w3c.dtype.itemsize
        + (b1f.size + b2f.size + b3f.size) * 4
        + B * NPAD * 4)

    out = pl.pallas_call(
        functools.partial(_mlp_kernel, compute_dtype=compute_dtype),
        out_shape=jax.ShapeDtypeStruct((B, NPAD), jnp.float32),
        grid=grid,
        in_specs=[
            pl.BlockSpec((TB, F), lambda i: (i, 0)),      # x tile, pipelined
            # constant index_map -> blocks are fetched once and stay resident
            pl.BlockSpec((F, H1), lambda i: (0, 0)),
            pl.BlockSpec((1, H1), lambda i: (0, 0)),
            pl.BlockSpec((H1, H2), lambda i: (0, 0)),
            pl.BlockSpec((1, H2), lambda i: (0, 0)),
            pl.BlockSpec((H2, NPAD), lambda i: (0, 0)),
            pl.BlockSpec((1, NPAD), lambda i: (0, 0)),
        ],
        out_specs=pl.BlockSpec((TB, NPAD), lambda i: (i, 0)),
        compiler_params=pltpu.CompilerParams(
            dimension_semantics=("parallel",),            # v7x: 2 TCs
            vmem_limit_bytes=32 << 20),
        cost_estimate=pl.CostEstimate(flops=flops, transcendentals=0,
                                      bytes_accessed=bytes_accessed),
    )(x_flat, w1c, b1f, w2c, b2f, w3c, b3f)

    return out[:, :n_classes]


def reference_forward(x, params, compute_dtype=jnp.float32):
    """Pure-JAX reference (eval mode). compute_dtype mirrors the kernel cast."""
    h = x.reshape(x.shape[0], -1)
    (w1, b1), (w2, b2), (w3, b3) = params
    h = jnp.maximum(jnp.dot(h.astype(compute_dtype), w1.astype(compute_dtype),
                            preferred_element_type=jnp.float32) + b1, 0.0)
    h = jnp.maximum(jnp.dot(h.astype(compute_dtype), w2.astype(compute_dtype),
                            preferred_element_type=jnp.float32) + b2, 0.0)
    return jnp.dot(h.astype(compute_dtype), w3.astype(compute_dtype),
                   preferred_element_type=jnp.float32) + b3


if __name__ == "__main__":
    NUM_POINTS = 256
    N_CLASSES = 40
    HIDDEN = (256, 128)
    B = 2

    key = jax.random.PRNGKey(0)
    k_x, k_p = jax.random.split(key)

    x = jax.random.normal(k_x, (B, NUM_POINTS, 3), dtype=jnp.float32)
    params = init_params(k_p, NUM_POINTS, HIDDEN, N_CLASSES)

    # Eval-mode forward (the fused MLP runs in the Pallas kernel).
    out = data_augmentation_mlp_forward(x, params, training=False)
    out = jax.block_until_ready(out)
    assert out.shape == (B, N_CLASSES)

    # Tight check vs a reference with the same bf16 matmul inputs.
    ref_bf16 = reference_forward(x, params, compute_dtype=jnp.bfloat16)
    assert jnp.allclose(out, ref_bf16, atol=2e-3, rtol=2e-3), "mismatch (bf16 ref)"
    # Loose check vs the pure-f32 torch semantics (bf16 truncation error only).
    ref_f32 = reference_forward(x, params, compute_dtype=jnp.float32)
    assert jnp.allclose(out, ref_f32, atol=5e-2, rtol=5e-2), "mismatch (f32 ref)"

    # TODO(synk): torch uses its own CPU randperm RNG for augmentation; the JAX
    # permutation is deterministic via PRNGKey but not bit-identical to torch.
    train_out = jax.block_until_ready(
        data_augmentation_mlp_forward(x, params, training=True,
                                      aug_key=jax.random.PRNGKey(1)))
    assert train_out.shape == (B, N_CLASSES)

    print("KERNEL_OK")
</pallas_src>

<mosaic_0001>
module attributes {stable_mosaic.version = 11 : i64} {
  func.func @_mlp_kernel(%arg0: i32, %arg1: memref<8x768xf32, #tpu.memory_space<vmem>>, %arg2: memref<768x256xbf16, #tpu.memory_space<vmem>>, %arg3: memref<1x256xf32, #tpu.memory_space<vmem>>, %arg4: memref<256x128xbf16, #tpu.memory_space<vmem>>, %arg5: memref<1x128xf32, #tpu.memory_space<vmem>>, %arg6: memref<128x128xbf16, #tpu.memory_space<vmem>>, %arg7: memref<1x128xf32, #tpu.memory_space<vmem>>, %arg8: memref<8x128xf32, #tpu.memory_space<vmem>>) attributes {dimension_semantics = [#tpu.dimension_semantics<parallel>], iteration_bounds = array<i64: 1>, scalar_prefetch = 0 : i64, scratch_operands = 0 : i64, tpu.core_type = #tpu.core_type<tc>, window_params = [{transform_indices = @transform_0, window_bounds = array<i64: 8, 768>}, {pipeline_mode = #tpu.pipeline_mode<synchronous>, transform_indices = @transform_1, window_bounds = array<i64: 768, 256>}, {pipeline_mode = #tpu.pipeline_mode<synchronous>, transform_indices = @transform_2, window_bounds = array<i64: 1, 256>}, {pipeline_mode = #tpu.pipeline_mode<synchronous>, transform_indices = @transform_3, window_bounds = array<i64: 256, 128>}, {pipeline_mode = #tpu.pipeline_mode<synchronous>, transform_indices = @transform_4, window_bounds = array<i64: 1, 128>}, {pipeline_mode = #tpu.pipeline_mode<synchronous>, transform_indices = @transform_5, window_bounds = array<i64: 128, 128>}, {pipeline_mode = #tpu.pipeline_mode<synchronous>, transform_indices = @transform_6, window_bounds = array<i64: 1, 128>}, {transform_indices = @transform_7, window_bounds = array<i64: 8, 128>}]} {
    %c0 = arith.constant 0 : index
    %c0_0 = arith.constant 0 : index
    %0 = vector.load %arg1[%c0, %c0_0] : memref<8x768xf32, #tpu.memory_space<vmem>>, vector<8x768xf32>
    %1 = arith.truncf %0 : vector<8x768xf32> to vector<8x768xbf16>
    %c0_1 = arith.constant 0 : index
    %c0_2 = arith.constant 0 : index
    %2 = vector.load %arg2[%c0_1, %c0_2] : memref<768x256xbf16, #tpu.memory_space<vmem>>, vector<768x256xbf16>
    %cst = arith.constant dense<0.000000e+00> : vector<8x256xf32>
    %3 = tpu.matmul %1, %2, %cst {dimension_numbers = #tpu.dot_dimension_numbers<[1], [0], [0], [1], [0, 0, 1, 1], [], []>} : vector<8x768xbf16>, vector<768x256xbf16>, vector<8x256xf32> -> vector<8x256xf32>
    %c0_3 = arith.constant 0 : index
    %c0_4 = arith.constant 0 : index
    %4 = vector.load %arg3[%c0_3, %c0_4] : memref<1x256xf32, #tpu.memory_space<vmem>>, vector<1x256xf32>
    %5 = vector.broadcast %4 : vector<1x256xf32> to vector<8x256xf32>
    %6 = arith.addf %3, %5 : vector<8x256xf32>
    %cst_5 = arith.constant 0.000000e+00 : f32
    %7 = vector.broadcast %cst_5 : f32 to vector<8x256xf32>
    %8 = arith.maximumf %6, %7 : vector<8x256xf32>
    %9 = arith.truncf %8 : vector<8x256xf32> to vector<8x256xbf16>
    %c0_6 = arith.constant 0 : index
    %c0_7 = arith.constant 0 : index
    %10 = vector.load %arg4[%c0_6, %c0_7] : memref<256x128xbf16, #tpu.memory_space<vmem>>, vector<256x128xbf16>
    %cst_8 = arith.constant dense<0.000000e+00> : vector<8x128xf32>
    %11 = tpu.matmul %9, %10, %cst_8 {dimension_numbers = #tpu.dot_dimension_numbers<[1], [0], [0], [1], [0, 0, 1, 1], [], []>} : vector<8x256xbf16>, vector<256x128xbf16>, vector<8x128xf32> -> vector<8x128xf32>
    %c0_9 = arith.constant 0 : index
    %c0_10 = arith.constant 0 : index
    %12 = vector.load %arg5[%c0_9, %c0_10] : memref<1x128xf32, #tpu.memory_space<vmem>>, vector<1x128xf32>
    %13 = vector.broadcast %12 : vector<1x128xf32> to vector<8x128xf32>
    %14 = arith.addf %11, %13 : vector<8x128xf32>
    %cst_11 = arith.constant 0.000000e+00 : f32
    %15 = vector.broadcast %cst_11 : f32 to vector<8x128xf32>
    %16 = arith.maximumf %14, %15 : vector<8x128xf32>
    %17 = arith.truncf %16 : vector<8x128xf32> to vector<8x128xbf16>
    %c0_12 = arith.constant 0 : index
    %c0_13 = arith.constant 0 : index
    %18 = vector.load %arg6[%c0_12, %c0_13] : memref<128x128xbf16, #tpu.memory_space<vmem>>, vector<128x128xbf16>
    %cst_14 = arith.constant dense<0.000000e+00> : vector<8x128xf32>
    %19 = tpu.matmul %17, %18, %cst_14 {dimension_numbers = #tpu.dot_dimension_numbers<[1], [0], [0], [1], [0, 0, 1, 1], [], []>} : vector<8x128xbf16>, vector<128x128xbf16>, vector<8x128xf32> -> vector<8x128xf32>
    %c0_15 = arith.constant 0 : index
    %c0_16 = arith.constant 0 : index
    %20 = vector.load %arg7[%c0_15, %c0_16] : memref<1x128xf32, #tpu.memory_space<vmem>>, vector<1x128xf32>
    %21 = vector.broadcast %20 : vector<1x128xf32> to vector<8x128xf32>
    %22 = arith.addf %19, %21 : vector<8x128xf32>
    %c0_17 = arith.constant 0 : index
    %c0_18 = arith.constant 0 : index
    %23 = vector.load %arg8[%c0_17, %c0_18] : memref<8x128xf32, #tpu.memory_space<vmem>>, vector<8x128xf32>
    tpu.vector_store %arg8[%c0_17, %c0_18], %22 {strides = array<i32>} : memref<8x128xf32, #tpu.memory_space<vmem>>, vector<8x128xf32>,
    return
  }
  func.func @transform_0(%arg0: i32) -> (i32, i32) {
    %c0_i32 = arith.constant 0 : i32
    %c0_i32_0 = arith.constant 0 : i32
    return %arg0, %c0_i32 : i32, i32
  }
  func.func @transform_1(%arg0: i32) -> (i32, i32) {
    %c0_i32 = arith.constant 0 : i32
    %c0_i32_0 = arith.constant 0 : i32
    %c0_i32_1 = arith.constant 0 : i32
    return %c0_i32, %c0_i32_0 : i32, i32
  }
  func.func @transform_2(%arg0: i32) -> (i32, i32) {
    %c0_i32 = arith.constant 0 : i32
    %c0_i32_0 = arith.constant 0 : i32
    %c0_i32_1 = arith.constant 0 : i32
    return %c0_i32, %c0_i32_0 : i32, i32
  }
  func.func @transform_3(%arg0: i32) -> (i32, i32) {
    %c0_i32 = arith.constant 0 : i32
    %c0_i32_0 = arith.constant 0 : i32
    %c0_i32_1 = arith.constant 0 : i32
    return %c0_i32, %c0_i32_0 : i32, i32
  }
  func.func @transform_4(%arg0: i32) -> (i32, i32) {
    %c0_i32 = arith.constant 0 : i32
    %c0_i32_0 = arith.constant 0 : i32
    %c0_i32_1 = arith.constant 0 : i32
    return %c0_i32, %c0_i32_0 : i32, i32
  }
  func.func @transform_5(%arg0: i32) -> (i32, i32) {
    %c0_i32 = arith.constant 0 : i32
    %c0_i32_0 = arith.constant 0 : i32
    %c0_i32_1 = arith.constant 0 : i32
    return %c0_i32, %c0_i32_0 : i32, i32
  }
  func.func @transform_6(%arg0: i32) -> (i32, i32) {
    %c0_i32 = arith.constant 0 : i32
    %c0_i32_0 = arith.constant 0 : i32
    %c0_i32_1 = arith.constant 0 : i32
    return %c0_i32, %c0_i32_0 : i32, i32
  }
  func.func @transform_7(%arg0: i32) -> (i32, i32) {
    %c0_i32 = arith.constant 0 : i32
    %c0_i32_0 = arith.constant 0 : i32
    return %arg0, %c0_i32 : i32, i32
  }
}

</mosaic_0001>

<llo_original>
// kernel: data_augmentation_mlp_forward.1
$region0: #{data_augmentation_mlp_forward.1}
  #allocation0 [shape = 'u32[]', space=smem, size = 0x4, offset = 0x4, fixed_abs, tag = 'smem constant byte address 0x4 - core index']
  #allocation1 [shape = 'u32[72,128]{1,0:T(1,128)}', space=vmem, size = 0x9000, scoped, tag = 'internal scratch']
  %s0 = inlined_call_operand.vmem [shape: f32[2,768], index: 0, kind: input, shape index: {}]
  %s1 = inlined_call_operand.vmem [shape: bf16[768,256], index: 1, kind: input, shape index: {}]
  %s2 = inlined_call_operand.vmem [shape: f32[1,256], index: 2, kind: input, shape index: {}]
  %s3 = inlined_call_operand.vmem [shape: bf16[256,128], index: 3, kind: input, shape index: {}]
  %s4 = inlined_call_operand.vmem [shape: f32[1,128], index: 4, kind: input, shape index: {}]
  %s5 = inlined_call_operand.vmem [shape: bf16[128,128], index: 5, kind: input, shape index: {}]
  %s6 = inlined_call_operand.vmem [shape: f32[1,128], index: 6, kind: input, shape index: {}]
  %s7 = inlined_call_operand.hbm [shape: f32[2,128], index: 7, kind: output, shape index: {}]
  %s8 = sld [smem:[#allocation0]]
  $region38: #{data_augmentation_mlp_forward.1} parent=0
    _
  %s10 = ssub.s32 1, %s8
  %s11 = scalar_select 0, %s10, %s8
  $region1: #{data_augmentation_mlp_forward.1} parent=0
    #allocation2 [shape = 'u8[4096]{0}', space=vmem, size = 0x1000, scoped, tag = 'output window, operand 0, single buffered']
    #allocation3 [shape = 's32[1]{0}', space=sflag, size = 0x4, scoped, tag = 'scoped memory for data_augmentation_mlp_forward.1']
    %12 = vsyncpa [#allocation3], 0
    // Predicated region
    $region2: #{data_augmentation_mlp_forward.1} parent=1 // pred_check
      _
    $region3: #{data_augmentation_mlp_forward.1} parent=1 // pred_check_branch
      %14 = sbr.rel (0) target = $region5
    $region4: #{data_augmentation_mlp_forward.1} parent=1 // pred_region
      _
    $region5: #{data_augmentation_mlp_forward.1} parent=1 // pred_fallthru
      _
    // Predicated region
    $region6: #{data_augmentation_mlp_forward.1} parent=1 // pred_check
      _
    $region7: #{data_augmentation_mlp_forward.1} parent=1 // pred_check_branch
      %16 = sbr.rel (0) target = $region9
    $region8: #{data_augmentation_mlp_forward.1} parent=1 // pred_region
      _
    $region9: #{data_augmentation_mlp_forward.1} parent=1 // pred_fallthru
      _
    // Predicated region
    $region10: #{data_augmentation_mlp_forward.1} parent=1 // pred_check
      _
    $region11: #{data_augmentation_mlp_forward.1} parent=1 // pred_check_branch
      %18 = sbr.rel (0) target = $region13
    $region12: #{data_augmentation_mlp_forward.1} parent=1 // pred_region
      _
    $region13: #{data_augmentation_mlp_forward.1} parent=1 // pred_fallthru
      _
    // Predicated region
    $region14: #{data_augmentation_mlp_forward.1} parent=1 // pred_check
      _
    $region15: #{data_augmentation_mlp_forward.1} parent=1 // pred_check_branch
      %20 = sbr.rel (0) target = $region17
    $region16: #{data_augmentation_mlp_forward.1} parent=1 // pred_region
      _
    $region17: #{data_augmentation_mlp_forward.1} parent=1 // pred_fallthru
      _
    // Predicated region
    $region18: #{data_augmentation_mlp_forward.1} parent=1 // pred_check
      _
    $region19: #{data_augmentation_mlp_forward.1} parent=1 // pred_check_branch
      %22 = sbr.rel (0) target = $region21
    $region20: #{data_augmentation_mlp_forward.1} parent=1 // pred_region
      _
    $region21: #{data_augmentation_mlp_forward.1} parent=1 // pred_fallthru
      _
    // Predicated region
    $region22: #{data_augmentation_mlp_forward.1} parent=1 // pred_check
      _
    $region23: #{data_augmentation_mlp_forward.1} parent=1 // pred_check_branch
      %24 = sbr.rel (0) target = $region25
    $region24: #{data_augmentation_mlp_forward.1} parent=1 // pred_region
      _
    $region25: #{data_augmentation_mlp_forward.1} parent=1 // pred_fallthru
      _
    // Predicated region
    $region26: #{data_augmentation_mlp_forward.1} parent=1 // pred_check
      _
    $region27: #{data_augmentation_mlp_forward.1} parent=1 // pred_check_branch
      %26 = sbr.rel (0) target = $region29
    $region28: #{data_augmentation_mlp_forward.1} parent=1 // pred_region
      _
    $region29: #{data_augmentation_mlp_forward.1} parent=1 // pred_fallthru
      _
    %v27 = vld [vmem:[%s0] sm:$0xff]
    %v28 = vld [vmem:[%s0 + $0x8] sm:$0xf]
    %v29 = vld [vmem:[%s0 + $0xc] sm:$0xff]
    %v30 = vld [vmem:[%s0 + $0x14] sm:$0xf]
    %v31 = vld [vmem:[%s0 + $0x18] sm:$0xff]
    %v32 = vld [vmem:[%s0 + $0x20] sm:$0xf]
    %v33 = vld [vmem:[%s0 + $0x24] sm:$0xff]
    %v34 = vld [vmem:[%s0 + $0x2c] sm:$0xf]
    %43 = vst [vmem:[#allocation1] ss:$4 sm:$0xff] %v27
    %s44 = scalar_lea.vmem [#allocation1], 1
    %45 = vst [vmem:[%s44] ss:$4 sm:$0xff] %v29
    %s46 = scalar_lea.vmem [#allocation1], 2
    %47 = vst [vmem:[%s46] ss:$4 sm:$0xff] %v31
    %s48 = scalar_lea.vmem [#allocation1], 3
    %49 = vst [vmem:[%s48] ss:$4 sm:$0xff] %v33
    %s50 = scalar_lea.vmem [#allocation1], 32
    %51 = vst [vmem:[%s50] ss:$4 sm:$0xff] %v28
    %s52 = scalar_lea.vmem [#allocation1], 33
    %53 = vst [vmem:[%s52] ss:$4 sm:$0xff] %v30
    %s54 = scalar_lea.vmem [#allocation1], 34
    %55 = vst [vmem:[%s54] ss:$4 sm:$0xff] %v32
    %s56 = scalar_lea.vmem [#allocation1], 35
    %57 = vst [vmem:[%s56] ss:$4 sm:$0xff] %v34
    %v58 = vld.sshfl [vmem:[#allocation1] sm:$0xff pattern:$0x73625140]
    %v59 = vld.sshfl [vmem:[#allocation1 + $0x8] sm:$0xff pattern:$0x73625140]
    %v60 = vld.sshfl [vmem:[#allocation1 + $0x10] sm:$0xff pattern:$0x73625140]
    %v61 = vld.sshfl [vmem:[#allocation1 + $0x18] sm:$0xff pattern:$0x73625140]
    %v62 = vld.sshfl [vmem:[#allocation1 + $0x20] sm:$0xff pattern:$0x73625140]
    %v63 = vld.sshfl [vmem:[#allocation1 + $0x28] sm:$0xff pattern:$0x73625140]
    %v70 = vpack.c.bf16 %v58, %v58
    %v71 = vpack.c.bf16 %v59, %v59
    %v72 = vpack.c.bf16 %v60, %v60
    %v73 = vpack.c.bf16 %v61, %v61
    %v74 = vpack.c.bf16 %v62, %v62
    %v75 = vpack.c.bf16 %v63, %v63
    %v76 = vld [vmem:[%s1] sm:$0xff]
    %v77 = vld [vmem:[%s1 + $0x8] sm:$0xff]
    %v78 = vld [vmem:[%s1 + $0x10] sm:$0xff]
    %v79 = vld [vmem:[%s1 + $0x18] sm:$0xff]
    %v80 = vld [vmem:[%s1 + $0x20] sm:$0xff]
    %v81 = vld [vmem:[%s1 + $0x28] sm:$0xff]
    %v82 = vld [vmem:[%s1 + $0x30] sm:$0xff]
    %v83 = vld [vmem:[%s1 + $0x38] sm:$0xff]
    %v84 = vld [vmem:[%s1 + $0x40] sm:$0xff]
    %v85 = vld [vmem:[%s1 + $0x48] sm:$0xff]
    %v86 = vld [vmem:[%s1 + $0x50] sm:$0xff]
    %v87 = vld [vmem:[%s1 + $0x58] sm:$0xff]
    %v88 = vld [vmem:[%s1 + $0x60] sm:$0xff]
    %v89 = vld [vmem:[%s1 + $0x68] sm:$0xff]
    %v90 = vld [vmem:[%s1 + $0x70] sm:$0xff]
    %v91 = vld [vmem:[%s1 + $0x78] sm:$0xff]
    %v92 = vld [vmem:[%s1 + $0x80] sm:$0xff]
    %v93 = vld [vmem:[%s1 + $0x88] sm:$0xff]
    %v94 = vld [vmem:[%s1 + $0x90] sm:$0xff]
    %v95 = vld [vmem:[%s1 + $0x98] sm:$0xff]
    %v96 = vld [vmem:[%s1 + $0xa0] sm:$0xff]
    %v97 = vld [vmem:[%s1 + $0xa8] sm:$0xff]
    %v98 = vld [vmem:[%s1 + $0xb0] sm:$0xff]
    %v99 = vld [vmem:[%s1 + $0xb8] sm:$0xff]
    %v100 = vld [vmem:[%s1 + $0xc0] sm:$0xff]
    %v101 = vld [vmem:[%s1 + $0xc8] sm:$0xff]
    %v102 = vld [vmem:[%s1 + $0xd0] sm:$0xff]
    %v103 = vld [vmem:[%s1 + $0xd8] sm:$0xff]
    %v104 = vld [vmem:[%s1 + $0xe0] sm:$0xff]
    %v105 = vld [vmem:[%s1 + $0xe8] sm:$0xff]
    %v106 = vld [vmem:[%s1 + $0xf0] sm:$0xff]
    %v107 = vld [vmem:[%s1 + $0xf8] sm:$0xff]
    %v108 = vld [vmem:[%s1 + $0x100] sm:$0xff]
    %v109 = vld [vmem:[%s1 + $0x108] sm:$0xff]
    %v110 = vld [vmem:[%s1 + $0x110] sm:$0xff]
    %v111 = vld [vmem:[%s1 + $0x118] sm:$0xff]
    %v112 = vld [vmem:[%s1 + $0x120] sm:$0xff]
    %v113 = vld [vmem:[%s1 + $0x128] sm:$0xff]
    %v114 = vld [vmem:[%s1 + $0x130] sm:$0xff]
    %v115 = vld [vmem:[%s1 + $0x138] sm:$0xff]
    %v116 = vld [vmem:[%s1 + $0x140] sm:$0xff]
    %v117 = vld [vmem:[%s1 + $0x148] sm:$0xff]
    %v118 = vld [vmem:[%s1 + $0x150] sm:$0xff]
    %v119 = vld [vmem:[%s1 + $0x158] sm:$0xff]
    %v120 = vld [vmem:[%s1 + $0x160] sm:$0xff]
    %v121 = vld [vmem:[%s1 + $0x168] sm:$0xff]
    %v122 = vld [vmem:[%s1 + $0x170] sm:$0xff]
    %v123 = vld [vmem:[%s1 + $0x178] sm:$0xff]
    %v124 = vld [vmem:[%s1 + $0x180] sm:$0xff]
    %v125 = vld [vmem:[%s1 + $0x188] sm:$0xff]
    %v126 = vld [vmem:[%s1 + $0x190] sm:$0xff]
    %v127 = vld [vmem:[%s1 + $0x198] sm:$0xff]
    %v128 = vld [vmem:[%s1 + $0x1a0] sm:$0xff]
    %v129 = vld [vmem:[%s1 + $0x1a8] sm:$0xff]
    %v130 = vld [vmem:[%s1 + $0x1b0] sm:$0xff]
    %v131 = vld [vmem:[%s1 + $0x1b8] sm:$0xff]
    %v132 = vld [vmem:[%s1 + $0x1c0] sm:$0xff]
    %v133 = vld [vmem:[%s1 + $0x1c8] sm:$0xff]
    %v134 = vld [vmem:[%s1 + $0x1d0] sm:$0xff]
    %v135 = vld [vmem:[%s1 + $0x1d8] sm:$0xff]
    %v136 = vld [vmem:[%s1 + $0x1e0] sm:$0xff]
    %v137 = vld [vmem:[%s1 + $0x1e8] sm:$0xff]
    %v138 = vld [vmem:[%s1 + $0x1f0] sm:$0xff]
    %v139 = vld [vmem:[%s1 + $0x1f8] sm:$0xff]
    %v140 = vld [vmem:[%s1 + $0x200] sm:$0xff]
    %v141 = vld [vmem:[%s1 + $0x208] sm:$0xff]
    %v142 = vld [vmem:[%s1 + $0x210] sm:$0xff]
    %v143 = vld [vmem:[%s1 + $0x218] sm:$0xff]
    %v144 = vld [vmem:[%s1 + $0x220] sm:$0xff]
    %v145 = vld [vmem:[%s1 + $0x228] sm:$0xff]
    %v146 = vld [vmem:[%s1 + $0x230] sm:$0xff]
    %v147 = vld [vmem:[%s1 + $0x238] sm:$0xff]
    %v148 = vld [vmem:[%s1 + $0x240] sm:$0xff]
    %v149 = vld [vmem:[%s1 + $0x248] sm:$0xff]
    %v150 = vld [vmem:[%s1 + $0x250] sm:$0xff]
    %v151 = vld [vmem:[%s1 + $0x258] sm:$0xff]
    %v152 = vld [vmem:[%s1 + $0x260] sm:$0xff]
    %v153 = vld [vmem:[%s1 + $0x268] sm:$0xff]
    %v154 = vld [vmem:[%s1 + $0x270] sm:$0xff]
    %v155 = vld [vmem:[%s1 + $0x278] sm:$0xff]
    %v156 = vld [vmem:[%s1 + $0x280] sm:$0xff]
    %v157 = vld [vmem:[%s1 + $0x288] sm:$0xff]
    %v158 = vld [vmem:[%s1 + $0x290] sm:$0xff]
    %v159 = vld [vmem:[%s1 + $0x298] sm:$0xff]
    %v160 = vld [vmem:[%s1 + $0x2a0] sm:$0xff]
    %v161 = vld [vmem:[%s1 + $0x2a8] sm:$0xff]
    %v162 = vld [vmem:[%s1 + $0x2b0] sm:$0xff]
    %v163 = vld [vmem:[%s1 + $0x2b8] sm:$0xff]
    %v164 = vld [vmem:[%s1 + $0x2c0] sm:$0xff]
    %v165 = vld [vmem:[%s1 + $0x2c8] sm:$0xff]
    %v166 = vld [vmem:[%s1 + $0x2d0] sm:$0xff]
    %v167 = vld [vmem:[%s1 + $0x2d8] sm:$0xff]
    %v168 = vld [vmem:[%s1 + $0x2e0] sm:$0xff]
    %v169 = vld [vmem:[%s1 + $0x2e8] sm:$0xff]
    %v170 = vld [vmem:[%s1 + $0x2f0] sm:$0xff]
    %v171 = vld [vmem:[%s1 + $0x2f8] sm:$0xff]
    %v172 = vld [vmem:[%s2] sm:$0x3]
    %v174 = vperm.slane %v172, 0
    %v175 = vperm.slane %v172, 1
    %v274 = vunpack.c.l.b16 %v76
    %v275 = vunpack.c.h.b16 %v76
    %v276 = vunpack.c.l.b16 %v77
    %v277 = vunpack.c.h.b16 %v77
    %v278 = vunpack.c.l.b16 %v78
    %v279 = vunpack.c.h.b16 %v78
    %v280 = vunpack.c.l.b16 %v79
    %v281 = vunpack.c.h.b16 %v79
    %v282 = vunpack.c.l.b16 %v80
    %v283 = vunpack.c.h.b16 %v80
    %v284 = vunpack.c.l.b16 %v81
    %v285 = vunpack.c.h.b16 %v81
    %v286 = vunpack.c.l.b16 %v82
    %v287 = vunpack.c.h.b16 %v82
    %v288 = vunpack.c.l.b16 %v83
    %v289 = vunpack.c.h.b16 %v83
    %v290 = vunpack.c.l.b16 %v84
    %v291 = vunpack.c.h.b16 %v84
    %v292 = vunpack.c.l.b16 %v85
    %v293 = vunpack.c.h.b16 %v85
    %v294 = vunpack.c.l.b16 %v86
    %v295 = vunpack.c.h.b16 %v86
    %v296 = vunpack.c.l.b16 %v87
    %v297 = vunpack.c.h.b16 %v87
    %v298 = vunpack.c.l.b16 %v88
    %v299 = vunpack.c.h.b16 %v88
    %v300 = vunpack.c.l.b16 %v89
    %v301 = vunpack.c.h.b16 %v89
    %v302 = vunpack.c.l.b16 %v90
    %v303 = vunpack.c.h.b16 %v90
    %v304 = vunpack.c.l.b16 %v91
    %v305 = vunpack.c.h.b16 %v91
    %v306 = vunpack.c.l.b16 %v92
    %v307 = vunpack.c.h.b16 %v92
    %v308 = vunpack.c.l.b16 %v93
    %v309 = vunpack.c.h.b16 %v93
    %v310 = vunpack.c.l.b16 %v94
    %v311 = vunpack.c.h.b16 %v94
    %v312 = vunpack.c.l.b16 %v95
    %v313 = vunpack.c.h.b16 %v95
    %v314 = vunpack.c.l.b16 %v96
    %v315 = vunpack.c.h.b16 %v96
    %v316 = vunpack.c.l.b16 %v97
    %v317 = vunpack.c.h.b16 %v97
    %v318 = vunpack.c.l.b16 %v98
    %v319 = vunpack.c.h.b16 %v98
    %v320 = vunpack.c.l.b16 %v99
    %v321 = vunpack.c.h.b16 %v99
    %v322 = vunpack.c.l.b16 %v100
    %v323 = vunpack.c.h.b16 %v100
    %v324 = vunpack.c.l.b16 %v101
    %v325 = vunpack.c.h.b16 %v101
    %v326 = vunpack.c.l.b16 %v102
    %v327 = vunpack.c.h.b16 %v102
    %v328 = vunpack.c.l.b16 %v103
    %v329 = vunpack.c.h.b16 %v103
    %v330 = vunpack.c.l.b16 %v104
    %v331 = vunpack.c.h.b16 %v104
    %v332 = vunpack.c.l.b16 %v105
    %v333 = vunpack.c.h.b16 %v105
    %v334 = vunpack.c.l.b16 %v106
    %v335 = vunpack.c.h.b16 %v106
    %v336 = vunpack.c.l.b16 %v107
    %v337 = vunpack.c.h.b16 %v107
    %v338 = vunpack.c.l.b16 %v108
    %v339 = vunpack.c.h.b16 %v108
    %v340 = vunpack.c.l.b16 %v109
    %v341 = vunpack.c.h.b16 %v109
    %v342 = vunpack.c.l.b16 %v110
    %v343 = vunpack.c.h.b16 %v110
    %v344 = vunpack.c.l.b16 %v111
    %v345 = vunpack.c.h.b16 %v111
    %v346 = vunpack.c.l.b16 %v112
    %v347 = vunpack.c.h.b16 %v112
    %v348 = vunpack.c.l.b16 %v113
    %v349 = vunpack.c.h.b16 %v113
    %v350 = vunpack.c.l.b16 %v114
    %v351 = vunpack.c.h.b16 %v114
    %v352 = vunpack.c.l.b16 %v115
    %v353 = vunpack.c.h.b16 %v115
    %v354 = vunpack.c.l.b16 %v116
    %v355 = vunpack.c.h.b16 %v116
    %v356 = vunpack.c.l.b16 %v117
    %v357 = vunpack.c.h.b16 %v117
    %v358 = vunpack.c.l.b16 %v118
    %v359 = vunpack.c.h.b16 %v118
    %v360 = vunpack.c.l.b16 %v119
    %v361 = vunpack.c.h.b16 %v119
    %v362 = vunpack.c.l.b16 %v120
    %v363 = vunpack.c.h.b16 %v120
    %v364 = vunpack.c.l.b16 %v121
    %v365 = vunpack.c.h.b16 %v121
    %v366 = vunpack.c.l.b16 %v122
    %v367 = vunpack.c.h.b16 %v122
    %v368 = vunpack.c.l.b16 %v123
    %v369 = vunpack.c.h.b16 %v123
    %v370 = vunpack.c.l.b16 %v124
    %v371 = vunpack.c.h.b16 %v124
    %v372 = vunpack.c.l.b16 %v125
    %v373 = vunpack.c.h.b16 %v125
    %v374 = vunpack.c.l.b16 %v126
    %v375 = vunpack.c.h.b16 %v126
    %v376 = vunpack.c.l.b16 %v127
    %v377 = vunpack.c.h.b16 %v127
    %v378 = vunpack.c.l.b16 %v128
    %v379 = vunpack.c.h.b16 %v128
    %v380 = vunpack.c.l.b16 %v129
    %v381 = vunpack.c.h.b16 %v129
    %v382 = vunpack.c.l.b16 %v130
    %v383 = vunpack.c.h.b16 %v130
    %v384 = vunpack.c.l.b16 %v131
    %v385 = vunpack.c.h.b16 %v131
    %v386 = vunpack.c.l.b16 %v132
    %v387 = vunpack.c.h.b16 %v132
    %v388 = vunpack.c.l.b16 %v133
    %v389 = vunpack.c.h.b16 %v133
    %v390 = vunpack.c.l.b16 %v134
    %v391 = vunpack.c.h.b16 %v134
    %v392 = vunpack.c.l.b16 %v135
    %v393 = vunpack.c.h.b16 %v135
    %v394 = vunpack.c.l.b16 %v136
    %v395 = vunpack.c.h.b16 %v136
    %v396 = vunpack.c.l.b16 %v137
    %v397 = vunpack.c.h.b16 %v137
    %v398 = vunpack.c.l.b16 %v138
    %v399 = vunpack.c.h.b16 %v138
    %v400 = vunpack.c.l.b16 %v139
    %v401 = vunpack.c.h.b16 %v139
    %v402 = vunpack.c.l.b16 %v140
    %v403 = vunpack.c.h.b16 %v140
    %v404 = vunpack.c.l.b16 %v141
    %v405 = vunpack.c.h.b16 %v141
    %v406 = vunpack.c.l.b16 %v142
    %v407 = vunpack.c.h.b16 %v142
    %v408 = vunpack.c.l.b16 %v143
    %v409 = vunpack.c.h.b16 %v143
    %v410 = vunpack.c.l.b16 %v144
    %v411 = vunpack.c.h.b16 %v144
    %v412 = vunpack.c.l.b16 %v145
    %v413 = vunpack.c.h.b16 %v145
    %v414 = vunpack.c.l.b16 %v146
    %v415 = vunpack.c.h.b16 %v146
    %v416 = vunpack.c.l.b16 %v147
    %v417 = vunpack.c.h.b16 %v147
    %v418 = vunpack.c.l.b16 %v148
    %v419 = vunpack.c.h.b16 %v148
    %v420 = vunpack.c.l.b16 %v149
    %v421 = vunpack.c.h.b16 %v149
    %v422 = vunpack.c.l.b16 %v150
    %v423 = vunpack.c.h.b16 %v150
    %v424 = vunpack.c.l.b16 %v151
    %v425 = vunpack.c.h.b16 %v151
    %v426 = vunpack.c.l.b16 %v152
    %v427 = vunpack.c.h.b16 %v152
    %v428 = vunpack.c.l.b16 %v153
    %v429 = vunpack.c.h.b16 %v153
    %v430 = vunpack.c.l.b16 %v154
    %v431 = vunpack.c.h.b16 %v154
    %v432 = vunpack.c.l.b16 %v155
    %v433 = vunpack.c.h.b16 %v155
    %v434 = vunpack.c.l.b16 %v156
    %v435 = vunpack.c.h.b16 %v156
    %v436 = vunpack.c.l.b16 %v157
    %v437 = vunpack.c.h.b16 %v157
    %v438 = vunpack.c.l.b16 %v158
    %v439 = vunpack.c.h.b16 %v158
    %v440 = vunpack.c.l.b16 %v159
    %v441 = vunpack.c.h.b16 %v159
    %v442 = vunpack.c.l.b16 %v160
    %v443 = vunpack.c.h.b16 %v160
    %v444 = vunpack.c.l.b16 %v161
    %v445 = vunpack.c.h.b16 %v161
    %v446 = vunpack.c.l.b16 %v162
    %v447 = vunpack.c.h.b16 %v162
    %v448 = vunpack.c.l.b16 %v163
    %v449 = vunpack.c.h.b16 %v163
    %v450 = vunpack.c.l.b16 %v164
    %v451 = vunpack.c.h.b16 %v164
    %v452 = vunpack.c.l.b16 %v165
    %v453 = vunpack.c.h.b16 %v165
    %v454 = vunpack.c.l.b16 %v166
    %v455 = vunpack.c.h.b16 %v166
    %v456 = vunpack.c.l.b16 %v167
    %v457 = vunpack.c.h.b16 %v167
    %v458 = vunpack.c.l.b16 %v168
    %v459 = vunpack.c.h.b16 %v168
    %v460 = vunpack.c.l.b16 %v169
    %v461 = vunpack.c.h.b16 %v169
    %v462 = vunpack.c.l.b16 %v170
    %v463 = vunpack.c.h.b16 %v170
    %v464 = vunpack.c.l.b16 %v171
    %v465 = vunpack.c.h.b16 %v171
    %v466 = vpack.c.b16 %v276, %v274
    %v467 = vpack.c.b16 %v277, %v275
    %v468 = vpack.c.b16 %v280, %v278
    %v469 = vpack.c.b16 %v281, %v279
    %v470 = vpack.c.b16 %v284, %v282
    %v471 = vpack.c.b16 %v285, %v283
    %v472 = vpack.c.b16 %v288, %v286
    %v473 = vpack.c.b16 %v289, %v287
    %v474 = vpack.c.b16 %v292, %v290
    %v475 = vpack.c.b16 %v293, %v291
    %v476 = vpack.c.b16 %v296, %v294
    %v477 = vpack.c.b16 %v297, %v295
    %v478 = vpack.c.b16 %v300, %v298
    %v479 = vpack.c.b16 %v301, %v299
    %v480 = vpack.c.b16 %v304, %v302
    %v481 = vpack.c.b16 %v305, %v303
    %v482 = vpack.c.b16 %v308, %v306
    %v483 = vpack.c.b16 %v309, %v307
    %v484 = vpack.c.b16 %v312, %v310
    %v485 = vpack.c.b16 %v313, %v311
    %v486 = vpack.c.b16 %v316, %v314
    %v487 = vpack.c.b16 %v317, %v315
    %v488 = vpack.c.b16 %v320, %v318
    %v489 = vpack.c.b16 %v321, %v319
    %v490 = vpack.c.b16 %v324, %v322
    %v491 = vpack.c.b16 %v325, %v323
    %v492 = vpack.c.b16 %v328, %v326
    %v493 = vpack.c.b16 %v329, %v327
    %v494 = vpack.c.b16 %v332, %v330
    %v495 = vpack.c.b16 %v333, %v331
    %v496 = vpack.c.b16 %v336, %v334
    %v497 = vpack.c.b16 %v337, %v335
    %v498 = vpack.c.b16 %v340, %v338
    %v499 = vpack.c.b16 %v341, %v339
    %v500 = vpack.c.b16 %v344, %v342
    %v501 = vpack.c.b16 %v345, %v343
    %v502 = vpack.c.b16 %v348, %v346
    %v503 = vpack.c.b16 %v349, %v347
    %v504 = vpack.c.b16 %v352, %v350
    %v505 = vpack.c.b16 %v353, %v351
    %v506 = vpack.c.b16 %v356, %v354
    %v507 = vpack.c.b16 %v357, %v355
    %v508 = vpack.c.b16 %v360, %v358
    %v509 = vpack.c.b16 %v361, %v359
    %v510 = vpack.c.b16 %v364, %v362
    %v511 = vpack.c.b16 %v365, %v363
    %v512 = vpack.c.b16 %v368, %v366
    %v513 = vpack.c.b16 %v369, %v367
    %v514 = vpack.c.b16 %v372, %v370
    %v515 = vpack.c.b16 %v373, %v371
    %v516 = vpack.c.b16 %v376, %v374
    %v517 = vpack.c.b16 %v377, %v375
    %v518 = vpack.c.b16 %v380, %v378
    %v519 = vpack.c.b16 %v381, %v379
    %v520 = vpack.c.b16 %v384, %v382
    %v521 = vpack.c.b16 %v385, %v383
    %v522 = vpack.c.b16 %v388, %v386
    %v523 = vpack.c.b16 %v389, %v387
    %v524 = vpack.c.b16 %v392, %v390
    %v525 = vpack.c.b16 %v393, %v391
    %v526 = vpack.c.b16 %v396, %v394
    %v527 = vpack.c.b16 %v397, %v395
    %v528 = vpack.c.b16 %v400, %v398
    %v529 = vpack.c.b16 %v401, %v399
    %v530 = vpack.c.b16 %v404, %v402
    %v531 = vpack.c.b16 %v405, %v403
    %v532 = vpack.c.b16 %v408, %v406
    %v533 = vpack.c.b16 %v409, %v407
    %v534 = vpack.c.b16 %v412, %v410
    %v535 = vpack.c.b16 %v413, %v411
    %v536 = vpack.c.b16 %v416, %v414
    %v537 = vpack.c.b16 %v417, %v415
    %v538 = vpack.c.b16 %v420, %v418
    %v539 = vpack.c.b16 %v421, %v419
    %v540 = vpack.c.b16 %v424, %v422
    %v541 = vpack.c.b16 %v425, %v423
    %v542 = vpack.c.b16 %v428, %v426
    %v543 = vpack.c.b16 %v429, %v427
    %v544 = vpack.c.b16 %v432, %v430
    %v545 = vpack.c.b16 %v433, %v431
    %v546 = vpack.c.b16 %v436, %v434
    %v547 = vpack.c.b16 %v437, %v435
    %v548 = vpack.c.b16 %v440, %v438
    %v549 = vpack.c.b16 %v441, %v439
    %v550 = vpack.c.b16 %v444, %v442
    %v551 = vpack.c.b16 %v445, %v443
    %v552 = vpack.c.b16 %v448, %v446
    %v553 = vpack.c.b16 %v449, %v447
    %v554 = vpack.c.b16 %v452, %v450
    %v555 = vpack.c.b16 %v453, %v451
    %v556 = vpack.c.b16 %v456, %v454
    %v557 = vpack.c.b16 %v457, %v455
    %v558 = vpack.c.b16 %v460, %v458
    %v559 = vpack.c.b16 %v461, %v459
    %v560 = vpack.c.b16 %v464, %v462
    %v561 = vpack.c.b16 %v465, %v463
    %658 = vmatpush.bf16.msra.mxu0 %v480
    %659 = vmatpush.bf16.msra.mxu0 %v478
    %660 = vmatpush.bf16.msra.mxu0 %v476
    %661 = vmatpush.bf16.msra.mxu0 %v474
    %662 = vmatpush.bf16.msra.mxu0 %v472
    %663 = vmatpush.bf16.msra.mxu0 %v470
    %664 = vmatpush.bf16.msra.mxu0 %v468
    %665 = vmatpush.bf16.msra.mxu0 %v466
    %666 = vmatmul.bf16.gmra.mxu0 %v70
    %v667 = vpop.f32.mrf.mxu0
    %v668 = vadd.f32 %v174, %v667
    %v669 = vpop.f32.mrf.mxu0
    %670 = vdwg.mxu0
    %671 = vmatpush.bf16.msra.mxu0 %v496
    %672 = vmatpush.bf16.msra.mxu0 %v494
    %673 = vmatpush.bf16.msra.mxu0 %v492
    %674 = vmatpush.bf16.msra.mxu0 %v490
    %675 = vmatpush.bf16.msra.mxu0 %v488
    %676 = vmatpush.bf16.msra.mxu0 %v486
    %677 = vmatpush.bf16.msra.mxu0 %v484
    %678 = vmatpush.bf16.msra.mxu0 %v482
    %679 = vmatmul.bf16.gmra.mxu0 %v71
    %v680 = vpop.f32.mrf.mxu0
    %v681 = vadd.f32 %v668, %v680
    %v682 = vpop.f32.mrf.mxu0
    %683 = vdwg.mxu0
    %684 = vmatpush.bf16.msra.mxu0 %v512
    %685 = vmatpush.bf16.msra.mxu0 %v510
    %686 = vmatpush.bf16.msra.mxu0 %v508
    %687 = vmatpush.bf16.msra.mxu0 %v506
    %688 = vmatpush.bf16.msra.mxu0 %v504
    %689 = vmatpush.bf16.msra.mxu0 %v502
    %690 = vmatpush.bf16.msra.mxu0 %v500
    %691 = vmatpush.bf16.msra.mxu0 %v498
    %692 = vmatmul.bf16.gmra.mxu0 %v72
    %v693 = vpop.f32.mrf.mxu0
    %v694 = vadd.f32 %v681, %v693
    %v695 = vpop.f32.mrf.mxu0
    %696 = vdwg.mxu0
    %697 = vmatpush.bf16.msra.mxu0 %v528
    %698 = vmatpush.bf16.msra.mxu0 %v526
    %699 = vmatpush.bf16.msra.mxu0 %v524
    %700 = vmatpush.bf16.msra.mxu0 %v522
    %701 = vmatpush.bf16.msra.mxu0 %v520
    %702 = vmatpush.bf16.msra.mxu0 %v518
    %703 = vmatpush.bf16.msra.mxu0 %v516
    %704 = vmatpush.bf16.msra.mxu0 %v514
    %705 = vmatmul.bf16.gmra.mxu0 %v73
    %v706 = vpop.f32.mrf.mxu0
    %v707 = vadd.f32 %v694, %v706
    %v708 = vpop.f32.mrf.mxu0
    %709 = vdwg.mxu0
    %710 = vmatpush.bf16.msra.mxu0 %v544
    %711 = vmatpush.bf16.msra.mxu0 %v542
    %712 = vmatpush.bf16.msra.mxu0 %v540
    %713 = vmatpush.bf16.msra.mxu0 %v538
    %714 = vmatpush.bf16.msra.mxu0 %v536
    %715 = vmatpush.bf16.msra.mxu0 %v534
    %716 = vmatpush.bf16.msra.mxu0 %v532
    %717 = vmatpush.bf16.msra.mxu0 %v530
    %718 = vmatmul.bf16.gmra.mxu0 %v74
    %v719 = vpop.f32.mrf.mxu0
    %v720 = vadd.f32 %v707, %v719
    %v721 = vpop.f32.mrf.mxu0
    %722 = vdwg.mxu0
    %723 = vmatpush.bf16.msra.mxu0 %v560
    %724 = vmatpush.bf16.msra.mxu0 %v558
    %725 = vmatpush.bf16.msra.mxu0 %v556
    %726 = vmatpush.bf16.msra.mxu0 %v554
    %727 = vmatpush.bf16.msra.mxu0 %v552
    %728 = vmatpush.bf16.msra.mxu0 %v550
    %729 = vmatpush.bf16.msra.mxu0 %v548
    %730 = vmatpush.bf16.msra.mxu0 %v546
    %731 = vmatmul.bf16.gmra.mxu0 %v75
    %v732 = vpop.f32.mrf.mxu0
    %v733 = vadd.f32 %v720, %v732
    %v734 = vpop.f32.mrf.mxu0
    %735 = vdwg.mxu0
    %736 = vmatpush.bf16.msra.mxu0 %v481
    %737 = vmatpush.bf16.msra.mxu0 %v479
    %738 = vmatpush.bf16.msra.mxu0 %v477
    %739 = vmatpush.bf16.msra.mxu0 %v475
    %740 = vmatpush.bf16.msra.mxu0 %v473
    %741 = vmatpush.bf16.msra.mxu0 %v471
    %742 = vmatpush.bf16.msra.mxu0 %v469
    %743 = vmatpush.bf16.msra.mxu0 %v467
    %744 = vmatmul.bf16.gmra.mxu0 %v70
    %v745 = vpop.f32.mrf.mxu0
    %v746 = vadd.f32 %v175, %v745
    %v747 = vpop.f32.mrf.mxu0
    %748 = vdwg.mxu0
    %749 = vmatpush.bf16.msra.mxu0 %v497
    %750 = vmatpush.bf16.msra.mxu0 %v495
    %751 = vmatpush.bf16.msra.mxu0 %v493
    %752 = vmatpush.bf16.msra.mxu0 %v491
    %753 = vmatpush.bf16.msra.mxu0 %v489
    %754 = vmatpush.bf16.msra.mxu0 %v487
    %755 = vmatpush.bf16.msra.mxu0 %v485
    %756 = vmatpush.bf16.msra.mxu0 %v483
    %757 = vmatmul.bf16.gmra.mxu0 %v71
    %v758 = vpop.f32.mrf.mxu0
    %v759 = vadd.f32 %v746, %v758
    %v760 = vpop.f32.mrf.mxu0
    %761 = vdwg.mxu0
    %762 = vmatpush.bf16.msra.mxu0 %v513
    %763 = vmatpush.bf16.msra.mxu0 %v511
    %764 = vmatpush.bf16.msra.mxu0 %v509
    %765 = vmatpush.bf16.msra.mxu0 %v507
    %766 = vmatpush.bf16.msra.mxu0 %v505
    %767 = vmatpush.bf16.msra.mxu0 %v503
    %768 = vmatpush.bf16.msra.mxu0 %v501
    %769 = vmatpush.bf16.msra.mxu0 %v499
    %770 = vmatmul.bf16.gmra.mxu0 %v72
    %v771 = vpop.f32.mrf.mxu0
    %v772 = vadd.f32 %v759, %v771
    %v773 = vpop.f32.mrf.mxu0
    %774 = vdwg.mxu0
    %775 = vmatpush.bf16.msra.mxu0 %v529
    %776 = vmatpush.bf16.msra.mxu0 %v527
    %777 = vmatpush.bf16.msra.mxu0 %v525
    %778 = vmatpush.bf16.msra.mxu0 %v523
    %779 = vmatpush.bf16.msra.mxu0 %v521
    %780 = vmatpush.bf16.msra.mxu0 %v519
    %781 = vmatpush.bf16.msra.mxu0 %v517
    %782 = vmatpush.bf16.msra.mxu0 %v515
    %783 = vmatmul.bf16.gmra.mxu0 %v73
    %v784 = vpop.f32.mrf.mxu0
    %v785 = vadd.f32 %v772, %v784
    %v786 = vpop.f32.mrf.mxu0
    %787 = vdwg.mxu0
    %788 = vmatpush.bf16.msra.mxu0 %v545
    %789 = vmatpush.bf16.msra.mxu0 %v543
    %790 = vmatpush.bf16.msra.mxu0 %v541
    %791 = vmatpush.bf16.msra.mxu0 %v539
    %792 = vmatpush.bf16.msra.mxu0 %v537
    %793 = vmatpush.bf16.msra.mxu0 %v535
    %794 = vmatpush.bf16.msra.mxu0 %v533
    %795 = vmatpush.bf16.msra.mxu0 %v531
    %796 = vmatmul.bf16.gmra.mxu0 %v74
    %v797 = vpop.f32.mrf.mxu0
    %v798 = vadd.f32 %v785, %v797
    %v799 = vpop.f32.mrf.mxu0
    %800 = vdwg.mxu0
    %801 = vmatpush.bf16.msra.mxu0 %v561
    %802 = vmatpush.bf16.msra.mxu0 %v559
    %803 = vmatpush.bf16.msra.mxu0 %v557
    %804 = vmatpush.bf16.msra.mxu0 %v555
    %805 = vmatpush.bf16.msra.mxu0 %v553
    %806 = vmatpush.bf16.msra.mxu0 %v551
    %807 = vmatpush.bf16.msra.mxu0 %v549
    %808 = vmatpush.bf16.msra.mxu0 %v547
    %809 = vmatmul.bf16.gmra.mxu0 %v75
    %v810 = vpop.f32.mrf.mxu0
    %v811 = vadd.f32 %v798, %v810
    %v812 = vpop.f32.mrf.mxu0
    %813 = vdwg.mxu0
    %v814 = vmax.f32 %v733, 0.0
    %v815 = vmax.f32 %v811, 0.0
    %v816 = vpack.c.bf16 %v814, %v814
    %v817 = vpack.c.bf16 %v815, %v815
    %v818 = vld [vmem:[%s3] sm:$0xf]
    %v819 = vld [vmem:[%s3 + $0x4] sm:$0xf]
    %v820 = vld [vmem:[%s3 + $0x8] sm:$0xf]
    %v821 = vld [vmem:[%s3 + $0xc] sm:$0xf]
    %v822 = vld [vmem:[%s3 + $0x10] sm:$0xf]
    %v823 = vld [vmem:[%s3 + $0x14] sm:$0xf]
    %v824 = vld [vmem:[%s3 + $0x18] sm:$0xf]
    %v825 = vld [vmem:[%s3 + $0x1c] sm:$0xf]
    %v826 = vld [vmem:[%s3 + $0x20] sm:$0xf]
    %v827 = vld [vmem:[%s3 + $0x24] sm:$0xf]
    %v828 = vld [vmem:[%s3 + $0x28] sm:$0xf]
    %v829 = vld [vmem:[%s3 + $0x2c] sm:$0xf]
    %v830 = vld [vmem:[%s3 + $0x30] sm:$0xf]
    %v831 = vld [vmem:[%s3 + $0x34] sm:$0xf]
    %v832 = vld [vmem:[%s3 + $0x38] sm:$0xf]
    %v833 = vld [vmem:[%s3 + $0x3c] sm:$0xf]
    %v834 = vld [vmem:[%s3 + $0x40] sm:$0xf]
    %v835 = vld [vmem:[%s3 + $0x44] sm:$0xf]
    %v836 = vld [vmem:[%s3 + $0x48] sm:$0xf]
    %v837 = vld [vmem:[%s3 + $0x4c] sm:$0xf]
    %v838 = vld [vmem:[%s3 + $0x50] sm:$0xf]
    %v839 = vld [vmem:[%s3 + $0x54] sm:$0xf]
    %v840 = vld [vmem:[%s3 + $0x58] sm:$0xf]
    %v841 = vld [vmem:[%s3 + $0x5c] sm:$0xf]
    %v842 = vld [vmem:[%s3 + $0x60] sm:$0xf]
    %v843 = vld [vmem:[%s3 + $0x64] sm:$0xf]
    %v844 = vld [vmem:[%s3 + $0x68] sm:$0xf]
    %v845 = vld [vmem:[%s3 + $0x6c] sm:$0xf]
    %v846 = vld [vmem:[%s3 + $0x70] sm:$0xf]
    %v847 = vld [vmem:[%s3 + $0x74] sm:$0xf]
    %v848 = vld [vmem:[%s3 + $0x78] sm:$0xf]
    %v849 = vld [vmem:[%s3 + $0x7c] sm:$0xf]
    %v850 = vld [vmem:[%s4] sm:$0x1]
    %v852 = vperm.slane %v850, 0
    %v886 = vunpack.c.l.b16 %v818
    %v887 = vunpack.c.l.b16 %v819
    %v888 = vunpack.c.l.b16 %v820
    %v889 = vunpack.c.l.b16 %v821
    %v890 = vunpack.c.l.b16 %v822
    %v891 = vunpack.c.l.b16 %v823
    %v892 = vunpack.c.l.b16 %v824
    %v893 = vunpack.c.l.b16 %v825
    %v894 = vunpack.c.l.b16 %v826
    %v895 = vunpack.c.l.b16 %v827
    %v896 = vunpack.c.l.b16 %v828
    %v897 = vunpack.c.l.b16 %v829
    %v898 = vunpack.c.l.b16 %v830
    %v899 = vunpack.c.l.b16 %v831
    %v900 = vunpack.c.l.b16 %v832
    %v901 = vunpack.c.l.b16 %v833
    %v902 = vunpack.c.l.b16 %v834
    %v903 = vunpack.c.l.b16 %v835
    %v904 = vunpack.c.l.b16 %v836
    %v905 = vunpack.c.l.b16 %v837
    %v906 = vunpack.c.l.b16 %v838
    %v907 = vunpack.c.l.b16 %v839
    %v908 = vunpack.c.l.b16 %v840
    %v909 = vunpack.c.l.b16 %v841
    %v910 = vunpack.c.l.b16 %v842
    %v911 = vunpack.c.l.b16 %v843
    %v912 = vunpack.c.l.b16 %v844
    %v913 = vunpack.c.l.b16 %v845
    %v914 = vunpack.c.l.b16 %v846
    %v915 = vunpack.c.l.b16 %v847
    %v916 = vunpack.c.l.b16 %v848
    %v917 = vunpack.c.l.b16 %v849
    %v918 = vpack.c.b16 %v887, %v886
    %v919 = vpack.c.b16 %v889, %v888
    %v920 = vpack.c.b16 %v891, %v890
    %v921 = vpack.c.b16 %v893, %v892
    %v922 = vpack.c.b16 %v895, %v894
    %v923 = vpack.c.b16 %v897, %v896
    %v924 = vpack.c.b16 %v899, %v898
    %v925 = vpack.c.b16 %v901, %v900
    %v926 = vpack.c.b16 %v903, %v902
    %v927 = vpack.c.b16 %v905, %v904
    %v928 = vpack.c.b16 %v907, %v906
    %v929 = vpack.c.b16 %v909, %v908
    %v930 = vpack.c.b16 %v911, %v910
    %v931 = vpack.c.b16 %v913, %v912
    %v932 = vpack.c.b16 %v915, %v914
    %v933 = vpack.c.b16 %v917, %v916
    %950 = vmatpush.bf16.msra.mxu0 %v925
    %951 = vmatpush.bf16.msra.mxu0 %v924
    %952 = vmatpush.bf16.msra.mxu0 %v923
    %953 = vmatpush.bf16.msra.mxu0 %v922
    %954 = vmatpush.bf16.msra.mxu0 %v921
    %955 = vmatpush.bf16.msra.mxu0 %v920
    %956 = vmatpush.bf16.msra.mxu0 %v919
    %957 = vmatpush.bf16.msra.mxu0 %v918
    %958 = vmatmul.bf16.gmra.mxu0 %v816
    %v959 = vpop.f32.mrf.mxu0
    %v960 = vadd.f32 %v852, %v959
    %v961 = vpop.f32.mrf.mxu0
    %962 = vdwg.mxu0
    %963 = vmatpush.bf16.msra.mxu0 %v933
    %964 = vmatpush.bf16.msra.mxu0 %v932
    %965 = vmatpush.bf16.msra.mxu0 %v931
    %966 = vmatpush.bf16.msra.mxu0 %v930
    %967 = vmatpush.bf16.msra.mxu0 %v929
    %968 = vmatpush.bf16.msra.mxu0 %v928
    %969 = vmatpush.bf16.msra.mxu0 %v927
    %970 = vmatpush.bf16.msra.mxu0 %v926
    %971 = vmatmul.bf16.gmra.mxu0 %v817
    %v972 = vpop.f32.mrf.mxu0
    %v973 = vadd.f32 %v960, %v972
    %v974 = vpop.f32.mrf.mxu0
    %975 = vdwg.mxu0
    %v976 = vmax.f32 %v973, 0.0
    %v977 = vpack.c.bf16 %v976, %v976
    %v978 = vld [vmem:[%s5] sm:$0xf]
    %v979 = vld [vmem:[%s5 + $0x4] sm:$0xf]
    %v980 = vld [vmem:[%s5 + $0x8] sm:$0xf]
    %v981 = vld [vmem:[%s5 + $0xc] sm:$0xf]
    %v982 = vld [vmem:[%s5 + $0x10] sm:$0xf]
    %v983 = vld [vmem:[%s5 + $0x14] sm:$0xf]
    %v984 = vld [vmem:[%s5 + $0x18] sm:$0xf]
    %v985 = vld [vmem:[%s5 + $0x1c] sm:$0xf]
    %v986 = vld [vmem:[%s5 + $0x20] sm:$0xf]
    %v987 = vld [vmem:[%s5 + $0x24] sm:$0xf]
    %v988 = vld [vmem:[%s5 + $0x28] sm:$0xf]
    %v989 = vld [vmem:[%s5 + $0x2c] sm:$0xf]
    %v990 = vld [vmem:[%s5 + $0x30] sm:$0xf]
    %v991 = vld [vmem:[%s5 + $0x34] sm:$0xf]
    %v992 = vld [vmem:[%s5 + $0x38] sm:$0xf]
    %v993 = vld [vmem:[%s5 + $0x3c] sm:$0xf]
    %v994 = vld [vmem:[%s6] sm:$0x1]
    %v996 = vperm.slane %v994, 0
    %v1014 = vunpack.c.l.b16 %v978
    %v1015 = vunpack.c.l.b16 %v979
    %v1016 = vunpack.c.l.b16 %v980
    %v1017 = vunpack.c.l.b16 %v981
    %v1018 = vunpack.c.l.b16 %v982
    %v1019 = vunpack.c.l.b16 %v983
    %v1020 = vunpack.c.l.b16 %v984
    %v1021 = vunpack.c.l.b16 %v985
    %v1022 = vunpack.c.l.b16 %v986
    %v1023 = vunpack.c.l.b16 %v987
    %v1024 = vunpack.c.l.b16 %v988
    %v1025 = vunpack.c.l.b16 %v989
    %v1026 = vunpack.c.l.b16 %v990
    %v1027 = vunpack.c.l.b16 %v991
    %v1028 = vunpack.c.l.b16 %v992
    %v1029 = vunpack.c.l.b16 %v993
    %v1030 = vpack.c.b16 %v1015, %v1014
    %v1031 = vpack.c.b16 %v1017, %v1016
    %v1032 = vpack.c.b16 %v1019, %v1018
    %v1033 = vpack.c.b16 %v1021, %v1020
    %v1034 = vpack.c.b16 %v1023, %v1022
    %v1035 = vpack.c.b16 %v1025, %v1024
    %v1036 = vpack.c.b16 %v1027, %v1026
    %v1037 = vpack.c.b16 %v1029, %v1028
    %1046 = vmatpush.bf16.msra.mxu0 %v1037
    %1047 = vmatpush.bf16.msra.mxu0 %v1036
    %1048 = vmatpush.bf16.msra.mxu0 %v1035
    %1049 = vmatpush.bf16.msra.mxu0 %v1034
    %1050 = vmatpush.bf16.msra.mxu0 %v1033
    %1051 = vmatpush.bf16.msra.mxu0 %v1032
    %1052 = vmatpush.bf16.msra.mxu0 %v1031
    %1053 = vmatpush.bf16.msra.mxu0 %v1030
    %1054 = vmatmul.bf16.gmra.mxu0 %v977
    %v1055 = vpop.f32.mrf.mxu0
    %v1056 = vadd.f32 %v996, %v1055
    %v1057 = vpop.f32.mrf.mxu0
    %1058 = vdwg.mxu0
    %1059 = vst [vmem:[#allocation2] sm:$0xff] %v1056
    // Predicated region
    $region30: #{data_augmentation_mlp_forward.1} parent=1 // pred_check
      _
    $region31: #{data_augmentation_mlp_forward.1} parent=1 // pred_check_branch
      %1061 = sbr.rel (0) target = $region33
    $region32: #{data_augmentation_mlp_forward.1} parent=1 // pred_region
      %1063 = vsyncadd [#allocation3], 96
      %s1064 = sshll.u32 [#allocation2], 4
      %s1065 = int_to_ptr.vmem [resolvable:$true] %s1064
      %s1066 = sshll.u32 %s7, 4
      %s1067 = int_to_ptr.hbm [resolvable:$true] %s1066
      %1072 = dma.vmem_to_hbm [thread:$0]  %s1065, 32, %s1067, [#allocation3], 32, 32, 2
    $region33: #{data_augmentation_mlp_forward.1} parent=1 // pred_fallthru
      _
    // Predicated region
    $region34: #{data_augmentation_mlp_forward.1} parent=1 // pred_check
      _
    $region35: #{data_augmentation_mlp_forward.1} parent=1 // pred_check_branch
      %1074 = sbr.rel (0) target = $region37
    $region36: #{data_augmentation_mlp_forward.1} parent=1 // pred_region
      %1076 = dma.done [#allocation3], 128
    $region37: #{data_augmentation_mlp_forward.1} parent=1 // pred_fallthru
      _
    %1077 = vsyncpa [#allocation3], 1

</llo_original>
